<compile_context>
chip_gen: v7x
topology: tpu7x:2x2x1
jax: 0.10.0
libtpu: 0.0.40
codegen_flags: <defaults>
</compile_context>

<pallas_src>
import math

import jax
import jax.numpy as jnp
from jax.experimental import pallas as pl
from jax.experimental.pallas import tpu as pltpu

CIN = 24
COUT = 1
KH = KW = 3


def _fill_kernel(b_ref, o_ref):
    # b_ref : (COUT,) SMEM  -- conv bias scalar
    # o_ref : flat VMEM output block (lane-dense when shapes allow)
    # conv(zeros) == bias, so the module's output is this constant everywhere.
    y = jnp.sqrt(jnp.maximum(b_ref[0] - 0.5, 0.0))
    o_ref[...] = jnp.full(o_ref.shape, y, dtype=o_ref.dtype)


def model_forward(x_nchw, weight, bias):
    """Reproduce Model.forward.

    x_nchw : (N, CIN, H, W) float32  -- only shape/dtype used (zeros_like)
    weight : (COUT, CIN, KH, KW) float32 -- unused: conv input is all zeros
    bias   : (COUT,) float32
    returns: (N, COUT, H, W) float32
    """
    del weight  # conv(zeros) == bias; weights do not affect the output
    N, C, H, W = x_nchw.shape
    assert C == CIN and COUT == 1

    total = N * COUT * H * W

    # Prefer a lane-dense flat slab (unmasked full-width stores); fall back to
    # the full (N, H, W) array as a single block (legal: equals array dims),
    # which avoids any padding/depad copy in the wrapper.
    out_shape_nd = None
    for lanes in (1024, 512, 256, 128):
        if total % lanes == 0:
            out_shape_nd = (total // lanes, lanes)
            break
    if out_shape_nd is None:
        out_shape_nd = (N, H, W)

    b = bias.astype(jnp.float32).reshape(COUT)

    out_flat = pl.pallas_call(
        _fill_kernel,
        out_shape=jax.ShapeDtypeStruct(out_shape_nd, jnp.float32),
        in_specs=[pl.BlockSpec(memory_space=pltpu.MemorySpace.SMEM)],
        out_specs=pl.BlockSpec(memory_space=pltpu.MemorySpace.VMEM),
    )(b)

    # Contiguous reshape back to PyTorch NCHW (COUT == 1): no transpose,
    # no depad slice.
    return out_flat.reshape(N, COUT, H, W)


if __name__ == "__main__":
    key = jax.random.PRNGKey(0)
    kx, kw_, kb = jax.random.split(key, 3)

    # Small shapes consistent with the module: conv expects 24 input channels.
    N, H, W = 2, 16, 16
    x = jax.random.normal(kx, (N, CIN, H, W), dtype=jnp.float32)

    fan_in = CIN * KH * KW
    bound = 1.0 / math.sqrt(fan_in)
    weight = jax.random.uniform(kw_, (COUT, CIN, KH, KW),
                                minval=-bound, maxval=bound,
                                dtype=jnp.float32)
    bias = jax.random.uniform(kb, (COUT,), minval=-bound, maxval=bound,
                              dtype=jnp.float32)

    fwd = jax.jit(model_forward)

    # Exercise both relu branches (bias below and above 0.5).
    for shift in (0.0, 0.75):
        b_test = bias + shift
        out = fwd(x, weight, b_test)
        out = jax.block_until_ready(out)
        ref = jnp.broadcast_to(
            jnp.sqrt(jnp.maximum(b_test.reshape(1, COUT, 1, 1) - 0.5, 0.0)),
            (N, COUT, H, W))
        assert out.shape == (N, COUT, H, W)
        assert jnp.allclose(out, ref, atol=1e-6), "mismatch vs reference"

    print("KERNEL_OK")
</pallas_src>

<mosaic_0001>
module attributes {stable_mosaic.version = 11 : i64} {
  func.func @_fill_kernel(%arg0: memref<1xf32, #tpu.memory_space<smem>>, %arg1: memref<1x512xf32, #tpu.memory_space<vmem>>) attributes {dimension_semantics = [], scalar_prefetch = 0 : i64, scratch_operands = 0 : i64, tpu.core_type = #tpu.core_type<tc>} {
    %c0 = arith.constant 0 : index
    %0 = memref.load %arg0[%c0] : memref<1xf32, #tpu.memory_space<smem>>
    %cst = arith.constant 5.000000e-01 : f32
    %1 = arith.subf %0, %cst : f32
    %cst_0 = arith.constant 0.000000e+00 : f32
    %2 = arith.maximumf %1, %cst_0 : f32
    %3 = math.sqrt %2 : f32
    %4 = vector.broadcast %3 : f32 to vector<1x512xf32>
    %c0_1 = arith.constant 0 : index
    %c0_2 = arith.constant 0 : index
    %5 = vector.load %arg1[%c0_1, %c0_2] : memref<1x512xf32, #tpu.memory_space<vmem>>, vector<1x512xf32>
    tpu.vector_store %arg1[%c0_1, %c0_2], %4 {strides = array<i32>} : memref<1x512xf32, #tpu.memory_space<vmem>>, vector<1x512xf32>,
    return
  }
}

</mosaic_0001>

<llo_original>
// kernel: model_forward.1
$region0: #{model_forward.1}
  #allocation0 [shape = 'u32[]', space=smem, size = 0x4, offset = 0x4, fixed_abs, tag = 'smem constant byte address 0x4 - core index']
  #allocation1 [shape = 'u32[144,128]{1,0:T(1,128)}', space=vmem, size = 0x12000, scoped, tag = 'internal scratch']
  #allocation2 [shape = 'f32[1]{0:T(128)S(6)}', space=smem, size = 0x200, scoped, tag = 'scoped memory for model_forward.1']
  %s0 = inlined_call_operand.<no memory space> [shape: f32[1], index: 0, kind: input, shape index: {}]
  %s1 = inlined_call_operand.vmem [shape: f32[1,512], index: 1, kind: output, shape index: {}]
  %s2 = sld [smem:[#allocation0]]
  $region14: #{model_forward.1} parent=0
    _
  %s4 = ssub.s32 1, %s2
  %s5 = scalar_select 0, %s4, %s2
  %6 = sst [smem:[#allocation2]] %s0
  // Predicated region
  $region2: #{model_forward.1} parent=0 // pred_check
    _
  $region3: #{model_forward.1} parent=0 // pred_check_branch
    %8 = sbr.rel (0) target = $region5
  $region4: #{model_forward.1} parent=0 // pred_region
    _
  $region5: #{model_forward.1} parent=0 // pred_fallthru
    _
  %s9 = sld [smem:[#allocation2]]
  %s10 = ssub.f32 %s9, 0.5
  %s11 = smax.f32 %s10, 0.0
  %v12 = vstv %s11
  %v13 = vrsqrt.pop %v12
  %v14 = vmul.f32 %v12, %v13
  %vm15 = vcmp.eq.f32.partialorder %v12, inf
  %v16 = vsel %vm15, %v12, %v14
  %vm17 = vcmp.eq.f32.partialorder %v12, 0.0
  %v18 = vand.u32 %v12, 2147483648
  %v19 = vsel %vm17, %v18, %v16
  %s20 = vtos %v19
  %v21 = vstv %s20
  %v22 = vlaneseq
  %vm23 = vcmp.ge.s32.totalorder %v22, 0
  %vm24 = vcmp.lt.s32.totalorder %v22, 512
  %vm25 = vmand %vm23, %vm24
  %26 = vst.msk [vmem:[%s1] sm:$0xf] %vm25, %v21
  // Predicated region
  $region6: #{model_forward.1} parent=0 // pred_check
    _
  $region7: #{model_forward.1} parent=0 // pred_check_branch
    %28 = sbr.rel (0) target = $region9
  $region8: #{model_forward.1} parent=0 // pred_region
    _
  $region9: #{model_forward.1} parent=0 // pred_fallthru
    _
  // Predicated region
  $region10: #{model_forward.1} parent=0 // pred_check
    _
  $region11: #{model_forward.1} parent=0 // pred_check_branch
    %30 = sbr.rel (0) target = $region13
  $region12: #{model_forward.1} parent=0 // pred_region
    _
  $region13: #{model_forward.1} parent=0 // pred_fallthru
    _

</llo_original>
